<compile_context>
chip_gen: v5e
topology: v5e:2x2
jax: 0.10.0
libtpu: 0.0.40
codegen_flags: <defaults>
</compile_context>

<pallas_src>
import jax
import jax.numpy as jnp
from jax.experimental import pallas as pl
from jax.experimental.pallas import tpu as pltpu


_VMEM_BUDGET_BYTES = 40 * 1024 * 1024   # target live-tile footprint (fits v7x 64 MiB VMEM)
_VMEM_LIMIT_BYTES = 48 * 1024 * 1024    # explicit scoped-VMEM limit (> 32 MiB default)


def _round_up(x, m):
    return (x + m - 1) // m * m


def _patch_embed_kernel(x_ref, w_ref, b_ref, o_ref):
    # x_ref: (tm, K)  w_ref: (K, Ep)  b_ref: (1, Ep) f32  o_ref: (tm, Ep)
    acc = jnp.dot(x_ref[...], w_ref[...], preferred_element_type=jnp.float32)
    o_ref[...] = (acc + b_ref[...]).astype(o_ref.dtype)


def _choose_tm(tm, M, K, Ep, in_bytes, out_bytes):
    """Pick a row tile: big (amortize per-step overhead), VMEM-bounded, aligned."""
    row_mult = 16 if in_bytes < 4 else 8
    # Resident weight + bias (assume double-buffered to be conservative).
    fixed = 2 * (K * Ep * in_bytes + Ep * 4)
    # Double-buffered patches tile + double-buffered output tile, per row.
    per_row = 2 * K * in_bytes + 2 * Ep * out_bytes
    budget_rows = max(row_mult, (_VMEM_BUDGET_BYTES - fixed) // per_row)
    tm = min(tm, budget_rows, _round_up(M, row_mult))
    tm = max(row_mult, (tm // row_mult) * row_mult)
    return tm


def patch_embed(x, weight, bias, patch_size, flatten=True, *, tm=512,
                compute_dtype=None):
    """Pallas implementation of PatchEmbed.forward (norm_layer=None => Identity).

    x:      (B, C, H, W)   NCHW, like PyTorch
    weight: (E, Cin, ph, pw)  Conv2d weight (OIHW)
    bias:   (E,)
    compute_dtype: dtype fed to the MXU (e.g. jnp.bfloat16); default = x.dtype.
                   Accumulation is always f32; output keeps x.dtype.
    """
    B, C, H, W = x.shape
    ph, pw = patch_size
    E, Cin, kh, kw = weight.shape
    assert (kh, kw) == (ph, pw)
    assert H % ph == 0 and W % pw == 0

    out_dtype = x.dtype
    if compute_dtype is None:
        compute_dtype = x.dtype

    # channel-group trick: 'B (N C) H W -> (B N) C H W'
    if C != Cin:
        assert C % Cin == 0
        N = C // Cin
        x = x.reshape(B * N, Cin, H, W)
    else:
        N = 1
    Bp = x.shape[0]

    gh, gw = H // ph, W // pw
    num_patches = gh * gw
    K = Cin * ph * pw
    M = Bp * num_patches

    # patchify: (Bp, Cin, gh, ph, gw, pw) -> (Bp, gh, gw, Cin, ph, pw) -> (M, K)
    patches = x.reshape(Bp, Cin, gh, ph, gw, pw).transpose(0, 2, 4, 1, 3, 5)
    patches = patches.reshape(M, K).astype(compute_dtype)

    # Lane-dense output: pad E up to a multiple of 128.
    Ep = _round_up(E, 128)
    w2d = weight.reshape(E, K).T.astype(compute_dtype)      # (K, E)
    b1d = bias.astype(jnp.float32)
    if Ep != E:
        w2d = jnp.pad(w2d, ((0, 0), (0, Ep - E)))
        b1d = jnp.pad(b1d, (0, Ep - E))
    b2d = b1d.reshape(1, Ep)

    in_bytes = jnp.dtype(compute_dtype).itemsize
    out_bytes = jnp.dtype(out_dtype).itemsize
    tm = _choose_tm(tm, M, K, Ep, in_bytes, out_bytes)

    # Pad rows so the grid divides evenly (real ViT shapes: 196 patches etc.).
    Mp = _round_up(M, tm)
    if Mp != M:
        patches = jnp.pad(patches, ((0, Mp - M), (0, 0)))

    cost = pl.CostEstimate(
        flops=2 * Mp * K * Ep,
        transcendentals=0,
        bytes_accessed=Mp * K * in_bytes + K * Ep * in_bytes
                       + Ep * 4 + Mp * Ep * out_bytes,
    )

    out = pl.pallas_call(
        _patch_embed_kernel,
        out_shape=jax.ShapeDtypeStruct((Mp, Ep), out_dtype),
        grid_spec=pltpu.PrefetchScalarGridSpec(
            num_scalar_prefetch=0,
            grid=(Mp // tm,),
            in_specs=[
                pl.BlockSpec((tm, K), lambda i: (i, 0)),    # patch-row tile
                pl.BlockSpec((K, Ep), lambda i: (0, 0)),    # full weight, resident
                pl.BlockSpec((1, Ep), lambda i: (0, 0)),    # bias, resident
            ],
            out_specs=pl.BlockSpec((tm, Ep), lambda i: (i, 0)),
        ),
        compiler_params=pltpu.CompilerParams(
            dimension_semantics=("parallel",),
            vmem_limit_bytes=_VMEM_LIMIT_BYTES,
            # Let XLA fuse the patchify reshape/transpose into the Pallas input
            # DMA instead of materializing it in HBM (no-op if it can't fuse).
            allow_input_fusion=[True, False, False],
        ),
        cost_estimate=cost,
    )(patches, w2d, b2d)

    out = out[:M, :E]
    # out rows ordered as (B, N, gh, gw) -> flatten(2).transpose(1, 2)
    out = out.reshape(B, N * num_patches, E)
    if not flatten:
        # conv-shaped output: (B, E, N*gh, gw)
        out = out.reshape(B, N * gh, gw, E).transpose(0, 3, 1, 2)
    # norm is nn.Identity (norm_layer=None default) -> nothing to do.
    return out


def _reference_patch_embed(x, weight, bias, patch_size, flatten=True):
    """Pure-JAX reference mirroring the PyTorch forward (conv2d stride=patch)."""
    B, C, H, W = x.shape
    E, Cin, ph, pw = weight.shape
    if C != Cin:
        N = C // Cin
        x = x.reshape(B * N, Cin, H, W)
    else:
        N = 1
    y = jax.lax.conv_general_dilated(
        x, weight, window_strides=(ph, pw), padding="VALID",
        dimension_numbers=("NCHW", "OIHW", "NCHW"))
    y = y + bias.reshape(1, E, 1, 1)
    if C != Cin:
        Bp, _, gh, gw = y.shape
        y = y.reshape(B, N, E, gh, gw).transpose(0, 2, 1, 3, 4).reshape(B, E, N * gh, gw)
    if flatten:
        Bb, Ee, Hh, Ww = y.shape
        y = y.reshape(Bb, Ee, Hh * Ww).transpose(0, 2, 1)
    return y


if __name__ == "__main__":
    key = jax.random.PRNGKey(0)
    k_x, k_w, k_b, k_x2 = jax.random.split(key, 4)

    # Config 1: img 16x16, patch 4, in_chans 4, embed_dim 32.
    B, C, H, W = 2, 4, 16, 16
    in_chans, embed_dim = 4, 32
    patch = (4, 4)

    x = jax.random.normal(k_x, (B, C, H, W), dtype=jnp.float32)
    fan_in = in_chans * patch[0] * patch[1]
    weight = jax.random.uniform(
        k_w, (embed_dim, in_chans, patch[0], patch[1]),
        minval=-1.0, maxval=1.0, dtype=jnp.float32) / jnp.sqrt(fan_in)
    bias = jax.random.uniform(
        k_b, (embed_dim,), minval=-1.0, maxval=1.0, dtype=jnp.float32) / jnp.sqrt(fan_in)

    # f32 path, flatten=True
    out = jax.block_until_ready(patch_embed(x, weight, bias, patch))
    ref = _reference_patch_embed(x, weight, bias, patch)
    assert out.shape == (B, (H // patch[0]) * (W // patch[1]), embed_dim), out.shape
    assert jnp.allclose(out, ref, atol=1e-4, rtol=1e-4), float(jnp.max(jnp.abs(out - ref)))

    # f32 path, flatten=False (conv-shaped output)
    out_nf = jax.block_until_ready(patch_embed(x, weight, bias, patch, flatten=False))
    ref_nf = _reference_patch_embed(x, weight, bias, patch, flatten=False)
    assert out_nf.shape == ref_nf.shape, (out_nf.shape, ref_nf.shape)
    assert jnp.allclose(out_nf, ref_nf, atol=1e-4, rtol=1e-4)

    # bf16 MXU path (f32 accumulation) — looser tolerance
    out_bf16 = jax.block_until_ready(
        patch_embed(x, weight, bias, patch, compute_dtype=jnp.bfloat16))
    assert jnp.allclose(out_bf16, ref, atol=5e-2, rtol=5e-2), \
        float(jnp.max(jnp.abs(out_bf16 - ref)))

    # Config 2: channel-group path (C=8 with in_chans=4 -> N=2 groups).
    C2 = 8
    x2 = jax.random.normal(k_x2, (B, C2, H, W), dtype=jnp.float32)
    out2 = jax.block_until_ready(patch_embed(x2, weight, bias, patch))
    ref2 = _reference_patch_embed(x2, weight, bias, patch)
    assert out2.shape == ref2.shape, (out2.shape, ref2.shape)
    assert jnp.allclose(out2, ref2, atol=1e-4, rtol=1e-4)

    print("KERNEL_OK")
</pallas_src>

<mosaic_0001>
module attributes {stable_mosaic.version = 11 : i64} {
  func.func @_patch_embed_kernel(%arg0: i32, %arg1: memref<32x64xf32, #tpu.memory_space<vmem>>, %arg2: memref<64x128xf32, #tpu.memory_space<vmem>>, %arg3: memref<1x128xf32, #tpu.memory_space<vmem>>, %arg4: memref<32x128xf32, #tpu.memory_space<vmem>>) attributes {dimension_semantics = [#tpu.dimension_semantics<parallel>], iteration_bounds = array<i64: 1>, scalar_prefetch = 0 : i64, scratch_operands = 0 : i64, tpu.core_type = #tpu.core_type<tc>, window_params = [{transform_indices = @transform_0, window_bounds = array<i64: 32, 64>}, {pipeline_mode = #tpu.pipeline_mode<synchronous>, transform_indices = @transform_1, window_bounds = array<i64: 64, 128>}, {pipeline_mode = #tpu.pipeline_mode<synchronous>, transform_indices = @transform_2, window_bounds = array<i64: 1, 128>}, {transform_indices = @transform_3, window_bounds = array<i64: 32, 128>}]} {
    %c0 = arith.constant 0 : index
    %c0_0 = arith.constant 0 : index
    %0 = vector.load %arg1[%c0, %c0_0] : memref<32x64xf32, #tpu.memory_space<vmem>>, vector<32x64xf32>
    %c0_1 = arith.constant 0 : index
    %c0_2 = arith.constant 0 : index
    %1 = vector.load %arg2[%c0_1, %c0_2] : memref<64x128xf32, #tpu.memory_space<vmem>>, vector<64x128xf32>
    %cst = arith.constant dense<0.000000e+00> : vector<32x128xf32>
    %2 = tpu.matmul %0, %1, %cst {dimension_numbers = #tpu.dot_dimension_numbers<[1], [0], [0], [1], [0, 0, 1, 1], [], []>} : vector<32x64xf32>, vector<64x128xf32>, vector<32x128xf32> -> vector<32x128xf32>
    %c0_3 = arith.constant 0 : index
    %c0_4 = arith.constant 0 : index
    %3 = vector.load %arg3[%c0_3, %c0_4] : memref<1x128xf32, #tpu.memory_space<vmem>>, vector<1x128xf32>
    %4 = vector.broadcast %3 : vector<1x128xf32> to vector<32x128xf32>
    %5 = arith.addf %2, %4 : vector<32x128xf32>
    %c0_5 = arith.constant 0 : index
    %c0_6 = arith.constant 0 : index
    %6 = vector.load %arg4[%c0_5, %c0_6] : memref<32x128xf32, #tpu.memory_space<vmem>>, vector<32x128xf32>
    tpu.vector_store %arg4[%c0_5, %c0_6], %5 {strides = array<i32>} : memref<32x128xf32, #tpu.memory_space<vmem>>, vector<32x128xf32>,
    return
  }
  func.func @transform_0(%arg0: i32) -> (i32, i32) {
    %c0_i32 = arith.constant 0 : i32
    %c0_i32_0 = arith.constant 0 : i32
    return %arg0, %c0_i32 : i32, i32
  }
  func.func @transform_1(%arg0: i32) -> (i32, i32) {
    %c0_i32 = arith.constant 0 : i32
    %c0_i32_0 = arith.constant 0 : i32
    %c0_i32_1 = arith.constant 0 : i32
    return %c0_i32, %c0_i32_0 : i32, i32
  }
  func.func @transform_2(%arg0: i32) -> (i32, i32) {
    %c0_i32 = arith.constant 0 : i32
    %c0_i32_0 = arith.constant 0 : i32
    %c0_i32_1 = arith.constant 0 : i32
    return %c0_i32, %c0_i32_0 : i32, i32
  }
  func.func @transform_3(%arg0: i32) -> (i32, i32) {
    %c0_i32 = arith.constant 0 : i32
    %c0_i32_0 = arith.constant 0 : i32
    return %arg0, %c0_i32 : i32, i32
  }
}

</mosaic_0001>

<llo_original>
// kernel: tpu_custom_call.1
$region0: #{tpu_custom_call.1}
  #allocation0 [shape = 'u32[]', space=smem, size = 0x4, offset = 0x4, fixed_abs, tag = 'smem constant byte address 0x4 - core index']
  #allocation1 [shape = 'u32[72,128]{1,0:T(1,128)}', space=vmem, size = 0x9000, scoped, tag = 'internal scratch']
  %s0 = inlined_call_operand.hbm [shape: f32[32,64], index: 0, kind: input, shape index: {}]
  %s1 = inlined_call_operand.hbm [shape: f32[64,128], index: 1, kind: input, shape index: {}]
  %s2 = inlined_call_operand.vmem [shape: f32[1,128], index: 2, kind: input, shape index: {}]
  %s3 = inlined_call_operand.hbm [shape: f32[32,128], index: 3, kind: output, shape index: {}]
  %s4 = sld [smem:[#allocation0]]
  $region30: #{tpu_custom_call.1} parent=0
    _
  %s6 = ssub.s32 1, %s4
  %s7 = scalar_select 0, %s6, %s4
  $region1: #{tpu_custom_call.1} parent=0
    #allocation2 [shape = 'u8[16384]{0}', space=vmem, size = 0x4000, scoped, tag = 'input window, operand 0, single buffered']
    #allocation3 [shape = 's32[1]{0}', space=sflag, size = 0x4, scoped, tag = 'scoped memory for tpu_custom_call.1']
    #allocation4 [shape = 's32[1]{0}', space=sflag, size = 0x4, scoped, tag = 'scoped memory for tpu_custom_call.1']
    #allocation5 [shape = 'u8[32768]{0}', space=vmem, size = 0x8000, scoped, tag = 'input window, operand 1, single buffered']
    #allocation6 [shape = 's32[1]{0}', space=sflag, size = 0x4, scoped, tag = 'scoped memory for tpu_custom_call.1']
    #allocation7 [shape = 'u8[16384]{0}', space=vmem, size = 0x4000, scoped, tag = 'output window, operand 0, single buffered']
    %8 = vsyncpa [#allocation3], 0
    %9 = vsyncpa [#allocation6], 0
    %10 = vsyncpa [#allocation4], 0
    // Predicated region
    $region2: #{tpu_custom_call.1} parent=1 // pred_check
      _
    $region3: #{tpu_custom_call.1} parent=1 // pred_check_branch
      %12 = sbr.rel (0) target = $region5
    $region4: #{tpu_custom_call.1} parent=1 // pred_region
      %14 = vsyncadd [#allocation3], 0
      %s15 = sshll.u32 %s0, 4
      %s16 = int_to_ptr.hbm [resolvable:$true] %s15
      %s17 = sshll.u32 [#allocation2], 4
      %s18 = int_to_ptr.vmem [resolvable:$true] %s17
      %23 = dma.hbm_to_vmem [thread:$0]  %s16, 512, %s18, [#allocation3], 128, 128, 8
    $region5: #{tpu_custom_call.1} parent=1 // pred_fallthru
      _
    // Predicated region
    $region6: #{tpu_custom_call.1} parent=1 // pred_check
      _
    $region7: #{tpu_custom_call.1} parent=1 // pred_check_branch
      %25 = sbr.rel (0) target = $region9
    $region8: #{tpu_custom_call.1} parent=1 // pred_region
      %27 = vsyncadd [#allocation6], 0
      %s28 = sshll.u32 %s1, 4
      %s29 = int_to_ptr.hbm [resolvable:$true] %s28
      %s30 = sshll.u32 [#allocation5], 4
      %s31 = int_to_ptr.vmem [resolvable:$true] %s30
      %36 = dma.hbm_to_vmem [thread:$0]  %s29, 1024, %s31, [#allocation6], 128, 128, 8
    $region9: #{tpu_custom_call.1} parent=1 // pred_fallthru
      _
    // Predicated region
    $region10: #{tpu_custom_call.1} parent=1 // pred_check
      _
    $region11: #{tpu_custom_call.1} parent=1 // pred_check_branch
      %38 = sbr.rel (0) target = $region13
    $region12: #{tpu_custom_call.1} parent=1 // pred_region
      _
    $region13: #{tpu_custom_call.1} parent=1 // pred_fallthru
      _
    // Predicated region
    $region14: #{tpu_custom_call.1} parent=1 // pred_check
      _
    $region15: #{tpu_custom_call.1} parent=1 // pred_check_branch
      %40 = sbr.rel (0) target = $region17
    $region16: #{tpu_custom_call.1} parent=1 // pred_region
      %42 = dma.done [#allocation3], 512
    $region17: #{tpu_custom_call.1} parent=1 // pred_fallthru
      _
    // Predicated region
    $region18: #{tpu_custom_call.1} parent=1 // pred_check
      _
    $region19: #{tpu_custom_call.1} parent=1 // pred_check_branch
      %44 = sbr.rel (0) target = $region21
    $region20: #{tpu_custom_call.1} parent=1 // pred_region
      %46 = dma.done [#allocation6], 1024
    $region21: #{tpu_custom_call.1} parent=1 // pred_fallthru
      _
    %v47 = vld [vmem:[#allocation2] sm:$0xff]
    %v48 = vld [vmem:[#allocation2 + $0x8] sm:$0xff]
    %v49 = vld [vmem:[#allocation2 + $0x10] sm:$0xff]
    %v50 = vld [vmem:[#allocation2 + $0x18] sm:$0xff]
    %v51 = vld [vmem:[#allocation5] sm:$0xff]
    %v52 = vld [vmem:[#allocation5 + $0x8] sm:$0xff]
    %v53 = vld [vmem:[#allocation5 + $0x10] sm:$0xff]
    %v54 = vld [vmem:[#allocation5 + $0x18] sm:$0xff]
    %v55 = vld [vmem:[#allocation5 + $0x20] sm:$0xff]
    %v56 = vld [vmem:[#allocation5 + $0x28] sm:$0xff]
    %v57 = vld [vmem:[#allocation5 + $0x30] sm:$0xff]
    %v58 = vld [vmem:[#allocation5 + $0x38] sm:$0xff]
    %v59 = vld [vmem:[%s2] sm:$0x1]
    %v61 = vperm.slane %v59, 0
    %vm63 = vcmask 523264
    %v65 = vsel %vm63, %v47, 0
    %v68 = vsel %vm63, %v48, 0
    %v71 = vsel %vm63, %v49, 0
    %v74 = vsel %vm63, %v50, 0
    %76 = vmatpush.msra.mxu0 0.0
    %77 = vmatpush.msra.mxu0 0.0
    %78 = vmatpush.msra.mxu0 0.0
    %79 = vmatpush.msra.mxu0 0.0
    %80 = vmatpush.msra.mxu0 0.0
    %81 = vmatpush.msra.mxu0 0.0
    %82 = vmatpush.msra.mxu0 0.0
    %83 = vmatpush.msra.mxu0 0.0
    %84 = vmatpush.msra.mxu0 %v58
    %85 = vmatpush.msra.mxu0 %v57
    %86 = vmatpush.msra.mxu0 %v56
    %87 = vmatpush.msra.mxu0 %v55
    %88 = vmatpush.msra.mxu0 %v54
    %89 = vmatpush.msra.mxu0 %v53
    %90 = vmatpush.msra.mxu0 %v52
    %91 = vmatpush.msra.mxu0 %v51
    %92 = vmatmul.f32.gmra.mxu0 %v65
    %v93 = vpop.f32.mrf.mxu0
    %v94 = vadd.f32 %v61, %v93
    %95 = vmatmul.f32.gmra.mxu0 %v68
    %v96 = vpop.f32.mrf.mxu0
    %v97 = vadd.f32 %v61, %v96
    %98 = vmatmul.f32.gmra.mxu0 %v71
    %v99 = vpop.f32.mrf.mxu0
    %v100 = vadd.f32 %v61, %v99
    %101 = vmatmul.f32.gmra.mxu0 %v74
    %v102 = vpop.f32.mrf.mxu0
    %v103 = vadd.f32 %v61, %v102
    %104 = vdwg.mxu0
    %105 = vst [vmem:[#allocation7] sm:$0xff] %v94
    %106 = vst [vmem:[#allocation7 + $0x8] sm:$0xff] %v97
    %107 = vst [vmem:[#allocation7 + $0x10] sm:$0xff] %v100
    %108 = vst [vmem:[#allocation7 + $0x18] sm:$0xff] %v103
    // Predicated region
    $region22: #{tpu_custom_call.1} parent=1 // pred_check
      _
    $region23: #{tpu_custom_call.1} parent=1 // pred_check_branch
      %110 = sbr.rel (0) target = $region25
    $region24: #{tpu_custom_call.1} parent=1 // pred_region
      %112 = vsyncadd [#allocation4], 0
      %s113 = sshll.u32 [#allocation7], 4
      %s114 = int_to_ptr.vmem [resolvable:$true] %s113
      %s115 = sshll.u32 %s3, 4
      %s116 = int_to_ptr.hbm [resolvable:$true] %s115
      %121 = dma.vmem_to_hbm [thread:$0]  %s114, 512, %s116, [#allocation4], 128, 128, 8
    $region25: #{tpu_custom_call.1} parent=1 // pred_fallthru
      _
    // Predicated region
    $region26: #{tpu_custom_call.1} parent=1 // pred_check
      _
    $region27: #{tpu_custom_call.1} parent=1 // pred_check_branch
      %123 = sbr.rel (0) target = $region29
    $region28: #{tpu_custom_call.1} parent=1 // pred_region
      %125 = dma.done [#allocation4], 512
    $region29: #{tpu_custom_call.1} parent=1 // pred_fallthru
      _
    %126 = vsyncpa [#allocation3], 1
    %127 = vsyncpa [#allocation6], 1
    %128 = vsyncpa [#allocation4], 1

</llo_original>
